<compile_context>
chip_gen: v6e
topology: v6e:2x2x1
jax: 0.10.0
libtpu: 0.0.40
codegen_flags: <defaults>
</compile_context>

<pallas_src>
import jax
import jax.numpy as jnp
from jax.experimental import pallas as pl
from jax.experimental.pallas import tpu as pltpu

GN_EPS = 1e-5   # nn.GroupNorm default
WS_EPS = 1e-5   # weight-standardization eps (float32 inputs)


def _silu(z):
    return z * jax.nn.sigmoid(z)


def _weight_standardize(wt):
    # wt: [Cout, Cin, kh, kw]; mean/var over everything but the output channel.
    m = jnp.mean(wt, axis=(1, 2, 3), keepdims=True)
    v = jnp.var(wt, axis=(1, 2, 3), keepdims=True)       # unbiased=False
    return (wt - m) * jax.lax.rsqrt(v + WS_EPS)


def _round_up(x, m):
    return ((x + m - 1) // m) * m


def _device_kind():
    try:
        return jax.devices()[0].device_kind.lower()
    except Exception:
        return ""


def _vmem_limit_bytes():
    kind = _device_kind()
    if any(t in kind for t in ("v4", "v5", "v6")):
        return 100 * 1024 * 1024            # 128 MiB physical VMEM
    if "v7" in kind:
        return 56 * 1024 * 1024             # 64 MiB physical VMEM per TC
    return 32 * 1024 * 1024


# ---------------------------------------------------------------------------
# Pallas kernels
# ---------------------------------------------------------------------------
def _time_mlp_kernel(t_ref, w_ref, b_ref, out_ref):
    s = _silu(t_ref[...])
    out_ref[...] = jnp.dot(s, w_ref[...],
                           preferred_element_type=jnp.float32) + b_ref[...]


def _res_proj_kernel(x_ref, w_ref, b_ref, o_ref):
    # 1x1 residual conv as a plain GEMM over flattened (padded) rows.
    o_ref[0] = (jnp.dot(x_ref[0], w_ref[...],
                        preferred_element_type=jnp.float32)
                + b_ref[...]).astype(o_ref.dtype)


def _make_block_kernel(*, np_valid, ext, wp, tk, n_per_group,
                       has_scale_shift, has_res, stage_lhs, emit_halo):
    """Fused (3x3 WS-conv -> GroupNorm -> [scale/shift] -> SiLU [-> +res]).

    Grid = (batch, cout_tile, k) where k tiles the conv input channels
    ("arbitrary").  Activations live on a flattened padded (Hp x Wp) grid
    with `ext` halo rows on each side so every 3x3 tap is a static slice.
    """
    deltas = [(kh - 1) * wp + (kw - 1) for kh in range(3) for kw in range(3)]

    def kernel(*refs):
        (x_ref, w_ref, b_ref, gamma_ref, beta_ref,
         gmask_ref, gmaskT_ref, rmask_ref) = refs[:8]
        pos = 8
        if has_scale_shift:
            scale_ref, shift_ref = refs[pos:pos + 2]
            pos += 2
        if has_res:
            res_ref = refs[pos]
            pos += 1
        out_ref, acc_ref = refs[pos], refs[pos + 1]
        lhs_ref = refs[pos + 2] if stage_lhs else None

        k = pl.program_id(2)

        @pl.when(k == 0)
        def _init():
            # Fold the conv bias into the accumulator init (one less full
            # [Np, C] pass in the serial epilogue tail).
            acc_ref[...] = jnp.broadcast_to(b_ref[...], acc_ref.shape)

        if stage_lhs:
            # Stage the 9 shifted tap slices into one lane-aligned VMEM slab,
            # then a single long-K (9*tk) matmul per reduction step.
            for t, d in enumerate(deltas):
                lhs_ref[:, t * tk:(t + 1) * tk] = \
                    x_ref[0, pl.ds(ext + d, np_valid), :]
            acc_ref[...] += jnp.dot(lhs_ref[...], w_ref[0],
                                    preferred_element_type=jnp.float32)
        else:
            # v5e: K=128 already fills the MXU; skip the staging stores.
            for t, d in enumerate(deltas):
                acc_ref[...] += jnp.dot(
                    x_ref[0, pl.ds(ext + d, np_valid), :],
                    w_ref[0, pl.ds(t * tk, tk), :],
                    preferred_element_type=jnp.float32)

        @pl.when(k == pl.num_programs(2) - 1)
        def _epilogue():
            f32 = jnp.float32
            y = acc_ref[...]                               # [Np, tn] f32 (bias included)
            valid = rmask_ref[...] > 0.0                   # [Np, 1]
            gmask = gmask_ref[0]                           # [tn, gl] one-hot
            gmask_t = gmaskT_ref[0]                        # [gl, tn]

            # GroupNorm stats over valid rows / real channels only (f32,
            # single pass, via one-hot channel<->group matmuls).
            ym = jnp.where(valid, y, 0.0)
            s1 = jnp.dot(jnp.sum(ym, axis=0, keepdims=True), gmask,
                         preferred_element_type=f32)
            s2 = jnp.dot(jnp.sum(ym * ym, axis=0, keepdims=True), gmask,
                         preferred_element_type=f32)
            mean_g = s1 / n_per_group
            var_g = s2 / n_per_group - mean_g * mean_g
            mean_c = jnp.dot(mean_g, gmask_t, preferred_element_type=f32)
            var_c = jnp.dot(var_g, gmask_t, preferred_element_type=f32)

            yn = (y - mean_c) * jax.lax.rsqrt(var_c + GN_EPS)
            yn = yn * gamma_ref[...] + beta_ref[...]
            if has_scale_shift:
                yn = yn * (scale_ref[0] + 1.0) + shift_ref[0]
            act = _silu(yn)
            # Zero the pad ring so this output doubles as zero padding for the
            # next 3x3 conv.
            act = jnp.where(valid, act, 0.0)
            if has_res:
                act = act + res_ref[0].astype(f32)

            if emit_halo:
                # Zero-fill the halo rows so the consumer never reads
                # undefined data; then one lane-dense store of the valid rows.
                halo_zeros = jnp.zeros((ext, act.shape[1]), out_ref.dtype)
                out_ref[0, pl.ds(0, ext), :] = halo_zeros
                out_ref[0, pl.ds(ext + np_valid, ext), :] = halo_zeros
                out_ref[0, pl.ds(ext, np_valid), :] = act.astype(out_ref.dtype)
            else:
                out_ref[0] = act.astype(out_ref.dtype)

    return kernel


# ---------------------------------------------------------------------------
# pallas_call wrappers
# ---------------------------------------------------------------------------
def _run_block(x_ext, w_k, bias, gamma, beta, gmask3, gmask3_t, rmask, *,
               h, w, tk, tn, n_per_group, stage_lhs, emit_halo, out_dtype,
               vmem_limit, scale=None, shift=None, xres=None):
    b, np_ext_rows, _ = x_ext.shape
    nk, _, cout_p = w_k.shape
    wp = w + 2
    np_valid = (h + 2) * (w + 2)
    ext = (np_ext_rows - np_valid) // 2
    n_j = cout_p // tn
    gl = gmask3.shape[2]

    in_specs = [
        pl.BlockSpec((1, np_ext_rows, tk), lambda i, j, k: (i, 0, k)),   # activations (+halo)
        pl.BlockSpec((1, 9 * tk, tn),      lambda i, j, k: (k, 0, j)),   # conv taps (tap-major K)
        pl.BlockSpec((1, tn),              lambda i, j, k: (0, j)),      # conv bias
        pl.BlockSpec((1, tn),              lambda i, j, k: (0, j)),      # gn gamma
        pl.BlockSpec((1, tn),              lambda i, j, k: (0, j)),      # gn beta
        pl.BlockSpec((1, tn, gl),          lambda i, j, k: (j, 0, 0)),   # chan->group one-hot
        pl.BlockSpec((1, gl, tn),          lambda i, j, k: (j, 0, 0)),   # its transpose
        pl.BlockSpec((np_valid, 1),        lambda i, j, k: (0, 0)),      # valid-row mask
    ]
    args = [x_ext, w_k, bias, gamma, beta, gmask3, gmask3_t, rmask]

    has_ss = scale is not None
    if has_ss:
        in_specs += [pl.BlockSpec((1, 1, tn), lambda i, j, k: (i, 0, j)),
                     pl.BlockSpec((1, 1, tn), lambda i, j, k: (i, 0, j))]
        args += [scale, shift]
    has_res = xres is not None
    if has_res:
        in_specs += [pl.BlockSpec((1, np_valid, tn), lambda i, j, k: (i, 0, j))]
        args += [xres]

    out_rows = np_ext_rows if emit_halo else np_valid
    scratch = [pltpu.VMEM((np_valid, tn), jnp.float32)]
    if stage_lhs:
        scratch.append(pltpu.VMEM((np_valid, 9 * tk), x_ext.dtype))

    kernel = _make_block_kernel(
        np_valid=np_valid, ext=ext, wp=wp, tk=tk, n_per_group=n_per_group,
        has_scale_shift=has_ss, has_res=has_res,
        stage_lhs=stage_lhs, emit_halo=emit_halo)

    return pl.pallas_call(
        kernel,
        out_shape=jax.ShapeDtypeStruct((b, out_rows, cout_p), out_dtype),
        grid=(b, n_j, nk),
        in_specs=in_specs,
        out_specs=pl.BlockSpec((1, out_rows, tn), lambda i, j, k: (i, 0, j)),
        scratch_shapes=scratch,
        compiler_params=pltpu.CompilerParams(
            dimension_semantics=("parallel", "parallel", "arbitrary"),
            vmem_limit_bytes=vmem_limit),
    )(*args)


def resnet_block_forward(x, time_emb, params, groups=8,
                         compute_dtype=jnp.bfloat16, stage_lhs=None):
    """x: [B, Cin, H, W] (NCHW), time_emb: [B, T]. Returns [B, Cout, H, W] f32."""
    b, cin, h, w = x.shape
    cout = params["w1"].shape[0]
    assert cout % groups == 0
    f32 = jnp.float32
    hp, wp = h + 2, w + 2
    np_valid = hp * wp
    ext = _round_up(wp + 1, 8)          # halo so every 3x3 tap is a static slice

    kind = _device_kind()
    is_v5 = "v5" in kind
    if stage_lhs is None:
        stage_lhs = not is_v5           # v5e: 1 vst slot -> keep per-tap acc+=dot
    vmem_limit = _vmem_limit_bytes()

    # ---- lane-dense channel padding (multiples of 128) ----
    cin_p = _round_up(max(cin, 1), 128)
    cout_p = _round_up(cout, 128)
    cg = cout // groups

    def pick_tk(c):                     # conv reduction (input-channel) tile
        if (not is_v5) and c % 256 == 0:
            return 256                  # fill the 256-wide MXU contraction on v6e/v7x
        return 128

    def pick_tn(c_p):                   # output-channel tile (2nd "parallel" axis)
        if c_p > 256:
            for cand in (256, 128):
                if c_p % cand == 0 and cand % cg == 0:
                    return cand
        return c_p

    tk1, tk2 = pick_tk(cin_p), pick_tk(cout_p)
    tn = pick_tn(cout_p)
    n_j = cout_p // tn
    gl = tn // cg

    # ---- weights: WS in f32 at original shape, then pad + tap-major K layout ----
    def conv3_weights(wt, c_in, c_in_p, t_k):
        wt = _weight_standardize(wt.astype(f32))                    # [cout, c_in, 3, 3]
        wt = jnp.pad(wt, ((0, cout_p - cout), (0, c_in_p - c_in), (0, 0), (0, 0)))
        taps = jnp.transpose(wt, (2, 3, 1, 0)).reshape(9, c_in_p, cout_p)
        nk = c_in_p // t_k
        return (taps.reshape(9, nk, t_k, cout_p).transpose(1, 0, 2, 3)
                    .reshape(nk, 9 * t_k, cout_p).astype(compute_dtype))

    w1_k = conv3_weights(params["w1"], cin, cin_p, tk1)
    w2_k = conv3_weights(params["w2"], cout, cout_p, tk2)

    def pad_cvec(v):                    # (1, cout) -> (1, cout_p) f32, zero pad
        return jnp.pad(v.astype(f32), ((0, 0), (0, cout_p - cout)))

    b1, g1, be1 = pad_cvec(params["b1"]), pad_cvec(params["g1"]), pad_cvec(params["be1"])
    b2, g2, be2 = pad_cvec(params["b2"]), pad_cvec(params["g2"]), pad_cvec(params["be2"])

    # ---- time MLP: SiLU -> Linear(T, 2*Cout) -> (scale, shift), channel-padded ----
    temb = pl.pallas_call(
        _time_mlp_kernel,
        out_shape=jax.ShapeDtypeStruct((b, 2 * cout), f32),
    )(time_emb.astype(f32), params["mlp_w"].astype(f32), params["mlp_b"].astype(f32))
    scale = jnp.pad(temb[:, :cout], ((0, 0), (0, cout_p - cout))).reshape(b, 1, cout_p)
    shift = jnp.pad(temb[:, cout:], ((0, 0), (0, cout_p - cout))).reshape(b, 1, cout_p)

    # ---- GroupNorm one-hots (block-diagonal over Cout tiles) + valid-row mask ----
    c_loc = jnp.arange(tn)
    onehot = (c_loc[:, None] // cg) == jnp.arange(gl)[None, :]          # [tn, gl]
    real = (jnp.arange(n_j)[:, None] * tn + c_loc[None, :]) < cout      # [n_j, tn]
    gmask3 = (onehot[None] & real[:, :, None]).astype(f32)              # [n_j, tn, gl]
    gmask3_t = jnp.transpose(gmask3, (0, 2, 1))                         # [n_j, gl, tn]

    rows = jnp.arange(np_valid)
    ri, rj = rows // wp, rows % wp
    rmask = (((ri >= 1) & (ri <= h) & (rj >= 1) & (rj <= w))
             .astype(f32).reshape(np_valid, 1))

    # ---- activations: NCHW -> zero-padded NHWC rows (+ channel pad) (+ halo) ----
    x_nhwc = jnp.transpose(x, (0, 2, 3, 1))
    x_rows = (jnp.pad(x_nhwc, ((0, 0), (1, 1), (1, 1), (0, cin_p - cin)))
              .reshape(b, np_valid, cin_p).astype(compute_dtype))
    x_ext = jnp.pad(x_rows, ((0, 0), (ext, ext), (0, 0)))

    # ---- residual rows, streamed into block2's epilogue (no serial matmul tail) ----
    if cin != cout:
        wres = jnp.pad(params["wres"].reshape(cout, cin).T.astype(f32),
                       ((0, cin_p - cin), (0, cout_p - cout))).astype(compute_dtype)
        bres = pad_cvec(params["bres"])
        res_rows = pl.pallas_call(
            _res_proj_kernel,
            out_shape=jax.ShapeDtypeStruct((b, np_valid, cout_p), compute_dtype),
            grid=(b,),
            in_specs=[pl.BlockSpec((1, np_valid, cin_p), lambda i: (i, 0, 0)),
                      pl.BlockSpec((cin_p, cout_p), lambda i: (0, 0)),
                      pl.BlockSpec((1, cout_p), lambda i: (0, 0))],
            out_specs=pl.BlockSpec((1, np_valid, cout_p), lambda i: (i, 0, 0)),
            compiler_params=pltpu.CompilerParams(
                dimension_semantics=("parallel",),
                vmem_limit_bytes=vmem_limit),
        )(x_rows, wres, bres)
    else:
        res_rows = x_rows               # nn.Identity(): already padded & compute_dtype

    n_per_group = float(h * w * cg)

    # ---- block1: WS-conv3x3 -> GN -> *(scale+1)+shift -> SiLU  (halo output) ----
    h1_ext = _run_block(x_ext, w1_k, b1, g1, be1, gmask3, gmask3_t, rmask,
                        h=h, w=w, tk=tk1, tn=tn, n_per_group=n_per_group,
                        stage_lhs=stage_lhs, emit_halo=True,
                        out_dtype=compute_dtype, vmem_limit=vmem_limit,
                        scale=scale, shift=shift)

    # ---- block2: WS-conv3x3 -> GN -> SiLU -> + residual  (no halo, f32 out) ----
    out_rows = _run_block(h1_ext, w2_k, b2, g2, be2, gmask3, gmask3_t, rmask,
                          h=h, w=w, tk=tk2, tn=tn, n_per_group=n_per_group,
                          stage_lhs=stage_lhs, emit_halo=False,
                          out_dtype=f32, vmem_limit=vmem_limit,
                          xres=res_rows)

    out = out_rows.reshape(b, hp, wp, cout_p)[:, 1:h + 1, 1:w + 1, :cout]
    return jnp.transpose(out, (0, 3, 1, 2))


# ---------------------------------------------------------------------------
# Pure-JAX reference (mirrors the PyTorch module) for verification
# ---------------------------------------------------------------------------
def _ref_forward(x, t, p, groups):
    cout = p["w1"].shape[0]

    def conv(z, wt, bias, pad):
        y = jax.lax.conv_general_dilated(
            z, wt, (1, 1), [(pad, pad), (pad, pad)],
            dimension_numbers=("NCHW", "OIHW", "NCHW"))
        return y + bias[0][None, :, None, None]

    def gn(z, gamma, beta):
        bb, cc, hh, ww = z.shape
        zr = z.reshape(bb, groups, cc // groups, hh, ww)
        m = zr.mean(axis=(2, 3, 4), keepdims=True)
        v = zr.var(axis=(2, 3, 4), keepdims=True)
        zn = ((zr - m) * jax.lax.rsqrt(v + GN_EPS)).reshape(bb, cc, hh, ww)
        return zn * gamma[0][None, :, None, None] + beta[0][None, :, None, None]

    temb = _silu(t) @ p["mlp_w"] + p["mlp_b"]
    scale = temb[:, :cout][:, :, None, None]
    shift = temb[:, cout:][:, :, None, None]

    hh = conv(x, _weight_standardize(p["w1"]), p["b1"], 1)
    hh = gn(hh, p["g1"], p["be1"])
    hh = hh * (scale + 1.0) + shift
    hh = _silu(hh)

    hh = conv(hh, _weight_standardize(p["w2"]), p["b2"], 1)
    hh = gn(hh, p["g2"], p["be2"])
    hh = _silu(hh)

    res = conv(x, p["wres"], p["bres"], 0) if "wres" in p else x
    return hh + res


def _make_params(key, cin, cout, tdim, identity_res):
    keys = jax.random.split(key, 12)
    f32 = jnp.float32
    p = {
        "w1":    0.3 * jax.random.normal(keys[0], (cout, cin, 3, 3), f32),
        "b1":    0.1 * jax.random.normal(keys[1], (1, cout), f32),
        "g1":    1.0 + 0.1 * jax.random.normal(keys[2], (1, cout), f32),
        "be1":   0.1 * jax.random.normal(keys[3], (1, cout), f32),
        "w2":    0.3 * jax.random.normal(keys[4], (cout, cout, 3, 3), f32),
        "b2":    0.1 * jax.random.normal(keys[5], (1, cout), f32),
        "g2":    1.0 + 0.1 * jax.random.normal(keys[6], (1, cout), f32),
        "be2":   0.1 * jax.random.normal(keys[7], (1, cout), f32),
        "mlp_w": 0.2 * jax.random.normal(keys[8], (tdim, 2 * cout), f32),
        "mlp_b": 0.1 * jax.random.normal(keys[9], (1, 2 * cout), f32),
    }
    if not identity_res:
        p["wres"] = 0.3 * jax.random.normal(keys[10], (cout, cin, 1, 1), f32)
        p["bres"] = 0.1 * jax.random.normal(keys[11], (1, cout), f32)
    return p


if __name__ == "__main__":
    key = jax.random.PRNGKey(0)

    cases = [
        # (name,          B, Cin, Cout,  H,  W,  T, G, compute_dtype, tol,   stage)
        ("f32_conv_res",  2,   4,    8, 16, 16, 32, 8, jnp.float32,   2e-3,  None),
        ("bf16_conv_res", 2,   4,    8, 16, 16, 32, 8, jnp.bfloat16,  1.5e-1, None),
        ("f32_identity",  2,   8,    8, 10, 10, 32, 8, jnp.float32,   2e-3,  None),
        ("f32_ktile",     1, 256,  128,  8,  8, 32, 8, jnp.float32,   5e-3,  None),
        ("f32_couttile",  1,  64,  512,  8,  8, 32, 8, jnp.float32,   5e-3,  None),
        ("f32_pertap",    2,   4,    8, 12, 12, 32, 8, jnp.float32,   2e-3,  False),
    ]

    for name, B, Cin, Cout, H, W, T, G, cdt, tol, stage in cases:
        key, k0, k1, k2 = jax.random.split(key, 4)
        params = _make_params(k0, Cin, Cout, T, identity_res=(Cin == Cout))
        x = jax.random.normal(k1, (B, Cin, H, W), jnp.float32)
        time_emb = jax.random.normal(k2, (B, T), jnp.float32)

        out = resnet_block_forward(x, time_emb, params, groups=G,
                                   compute_dtype=cdt, stage_lhs=stage)
        out = jax.block_until_ready(out)
        ref = _ref_forward(x, time_emb, params, groups=G)

        assert out.shape == (B, Cout, H, W), (name, out.shape)
        err = float(jnp.max(jnp.abs(out - ref)))
        assert err < tol, f"{name}: max abs err {err} >= {tol}"

    print("KERNEL_OK")
</pallas_src>

<mosaic_0001>
module attributes {stable_mosaic.version = 11 : i64} {
  func.func @_time_mlp_kernel(%arg0: memref<2x32xf32, #tpu.memory_space<vmem>>, %arg1: memref<32x16xf32, #tpu.memory_space<vmem>>, %arg2: memref<1x16xf32, #tpu.memory_space<vmem>>, %arg3: memref<2x16xf32, #tpu.memory_space<vmem>>) attributes {dimension_semantics = [], scalar_prefetch = 0 : i64, scratch_operands = 0 : i64, tpu.core_type = #tpu.core_type<tc>} {
    %c0 = arith.constant 0 : index
    %c0_0 = arith.constant 0 : index
    %0 = vector.load %arg0[%c0, %c0_0] : memref<2x32xf32, #tpu.memory_space<vmem>>, vector<2x32xf32>
    %1 = arith.negf %0 : vector<2x32xf32>
    %2 = math.exp %1 : vector<2x32xf32>
    %cst = arith.constant 1.000000e+00 : f32
    %3 = vector.broadcast %cst : f32 to vector<2x32xf32>
    %4 = arith.addf %3, %2 : vector<2x32xf32>
    %5 = arith.divf %3, %4 : vector<2x32xf32>
    %6 = arith.mulf %0, %5 : vector<2x32xf32>
    %c0_1 = arith.constant 0 : index
    %c0_2 = arith.constant 0 : index
    %7 = vector.load %arg1[%c0_1, %c0_2] : memref<32x16xf32, #tpu.memory_space<vmem>>, vector<32x16xf32>
    %cst_3 = arith.constant dense<0.000000e+00> : vector<2x16xf32>
    %8 = tpu.matmul %6, %7, %cst_3 {dimension_numbers = #tpu.dot_dimension_numbers<[1], [0], [0], [1], [0, 0, 1, 1], [], []>} : vector<2x32xf32>, vector<32x16xf32>, vector<2x16xf32> -> vector<2x16xf32>
    %c0_4 = arith.constant 0 : index
    %c0_5 = arith.constant 0 : index
    %9 = vector.load %arg2[%c0_4, %c0_5] : memref<1x16xf32, #tpu.memory_space<vmem>>, vector<1x16xf32>
    %10 = vector.broadcast %9 : vector<1x16xf32> to vector<2x16xf32>
    %11 = arith.addf %8, %10 : vector<2x16xf32>
    %c0_6 = arith.constant 0 : index
    %c0_7 = arith.constant 0 : index
    %12 = vector.load %arg3[%c0_6, %c0_7] : memref<2x16xf32, #tpu.memory_space<vmem>>, vector<2x16xf32>
    tpu.vector_store %arg3[%c0_6, %c0_7], %11 {strides = array<i32>} : memref<2x16xf32, #tpu.memory_space<vmem>>, vector<2x16xf32>,
    return
  }
}

</mosaic_0001>

<llo_original>
// kernel: tpu_custom_call.1
$region0: #{tpu_custom_call.1}
  #allocation0 [shape = 'u32[]', space=smem, size = 0x4, offset = 0x4, fixed_abs, tag = 'smem constant byte address 0x4 - core index']
  #allocation1 [shape = 'u32[144,128]{1,0:T(1,128)}', space=vmem, size = 0x12000, scoped, tag = 'internal scratch']
  %s0 = inlined_call_operand.vmem [shape: f32[2,32], index: 0, kind: input, shape index: {}]
  %s1 = inlined_call_operand.vmem [shape: f32[32,16], index: 1, kind: input, shape index: {}]
  %s2 = inlined_call_operand.vmem [shape: f32[1,16], index: 2, kind: input, shape index: {}]
  %s3 = inlined_call_operand.hbm [shape: f32[2,16], index: 3, kind: output, shape index: {}]
  %s4 = sld [smem:[#allocation0]]
  $region22: #{tpu_custom_call.1} parent=0
    _
  %s6 = ssub.s32 1, %s4
  %s7 = scalar_select 0, %s6, %s4
  $region1: #{tpu_custom_call.1} parent=0
    #allocation2 [shape = 'u8[1024]{0}', space=vmem, size = 0x400, scoped, tag = 'output window, operand 0, single buffered']
    #allocation3 [shape = 's32[1]{0}', space=sflag, size = 0x4, scoped, tag = 'scoped memory for tpu_custom_call.1']
    %8 = vsyncpa [#allocation3], 0
    // Predicated region
    $region2: #{tpu_custom_call.1} parent=1 // pred_check
      _
    $region3: #{tpu_custom_call.1} parent=1 // pred_check_branch
      %10 = sbr.rel (0) target = $region5
    $region4: #{tpu_custom_call.1} parent=1 // pred_region
      _
    $region5: #{tpu_custom_call.1} parent=1 // pred_fallthru
      _
    // Predicated region
    $region6: #{tpu_custom_call.1} parent=1 // pred_check
      _
    $region7: #{tpu_custom_call.1} parent=1 // pred_check_branch
      %12 = sbr.rel (0) target = $region9
    $region8: #{tpu_custom_call.1} parent=1 // pred_region
      _
    $region9: #{tpu_custom_call.1} parent=1 // pred_fallthru
      _
    // Predicated region
    $region10: #{tpu_custom_call.1} parent=1 // pred_check
      _
    $region11: #{tpu_custom_call.1} parent=1 // pred_check_branch
      %14 = sbr.rel (0) target = $region13
    $region12: #{tpu_custom_call.1} parent=1 // pred_region
      _
    $region13: #{tpu_custom_call.1} parent=1 // pred_fallthru
      _
    %v15 = vld [vmem:[%s0] sm:$0x3]
    %v16 = vxor.u32 %v15, 2147483648
    %v17 = vmul.f32 %v16, 1.442695
    %v18 = vpow.pop %v17
    %v19 = vadd.f32 %v18, 1.0
    %v20 = vrcp.pop %v19
    %v21 = vmul.f32 1.0, %v20
    %v22 = vmul.f32 %v15, %v21
    %v23 = vld [vmem:[%s1] sm:$0xff]
    %v24 = vld [vmem:[%s1 + $0x8] sm:$0xff]
    %v25 = vld [vmem:[%s1 + $0x10] sm:$0xff]
    %v26 = vld [vmem:[%s1 + $0x18] sm:$0xff]
    %v27 = vld [vmem:[%s2] sm:$0x1]
    %v29 = vlaneseq
    %v30 = vshrl.u32 %v29, 7
    %v31 = vsub.s32 0, %v30
    %v32 = vrot.slane %v27, %v31
    %vm34 = vcmask 261120
    %v36 = vsel %vm34, %v22, 0
    %38 = vmatprep.subr.mxu0 0.0
    %39 = vmatpush1.msra.mxu0 0.0
    %40 = vmatprep.subr.mxu0 0.0
    %41 = vmatpush1.msra.mxu0 0.0
    %42 = vmatprep.subr.mxu0 0.0
    %43 = vmatpush1.msra.mxu0 0.0
    %44 = vmatprep.subr.mxu0 0.0
    %45 = vmatpush1.msra.mxu0 0.0
    %46 = vmatprep.subr.mxu0 0.0
    %47 = vmatpush1.msra.mxu0 0.0
    %48 = vmatprep.subr.mxu0 0.0
    %49 = vmatpush1.msra.mxu0 0.0
    %50 = vmatprep.subr.mxu0 0.0
    %51 = vmatpush1.msra.mxu0 0.0
    %52 = vmatprep.subr.mxu0 0.0
    %53 = vmatpush1.msra.mxu0 0.0
    %54 = vmatprep.subr.mxu0 0.0
    %55 = vmatpush1.msra.mxu0 0.0
    %56 = vmatprep.subr.mxu0 0.0
    %57 = vmatpush1.msra.mxu0 0.0
    %58 = vmatprep.subr.mxu0 0.0
    %59 = vmatpush1.msra.mxu0 0.0
    %60 = vmatprep.subr.mxu0 0.0
    %61 = vmatpush1.msra.mxu0 0.0
    %62 = vmatprep.subr.mxu0 0.0
    %63 = vmatpush1.msra.mxu0 %v26
    %64 = vmatprep.subr.mxu0 0.0
    %65 = vmatpush1.msra.mxu0 %v25
    %66 = vmatprep.subr.mxu0 0.0
    %67 = vmatpush1.msra.mxu0 %v24
    %68 = vmatprep.subr.mxu0 0.0
    %69 = vmatpush1.msra.mxu0 %v23
    %70 = vmatprep.subr.mxu0 0.0
    %71 = vmatpush2.msra.mxu0 0.0
    %72 = vmatprep.subr.mxu0 0.0
    %73 = vmatpush2.msra.mxu0 0.0
    %74 = vmatprep.subr.mxu0 0.0
    %75 = vmatpush2.msra.mxu0 0.0
    %76 = vmatprep.subr.mxu0 0.0
    %77 = vmatpush2.msra.mxu0 0.0
    %78 = vmatprep.subr.mxu0 0.0
    %79 = vmatpush2.msra.mxu0 0.0
    %80 = vmatprep.subr.mxu0 0.0
    %81 = vmatpush2.msra.mxu0 0.0
    %82 = vmatprep.subr.mxu0 0.0
    %83 = vmatpush2.msra.mxu0 0.0
    %84 = vmatprep.subr.mxu0 0.0
    %85 = vmatpush2.msra.mxu0 0.0
    %86 = vmatprep.subr.mxu0 0.0
    %87 = vmatpush2.msra.mxu0 0.0
    %88 = vmatprep.subr.mxu0 0.0
    %89 = vmatpush2.msra.mxu0 0.0
    %90 = vmatprep.subr.mxu0 0.0
    %91 = vmatpush2.msra.mxu0 0.0
    %92 = vmatprep.subr.mxu0 0.0
    %93 = vmatpush2.msra.mxu0 0.0
    %94 = vmatprep.subr.mxu0 0.0
    %95 = vmatpush2.msra.mxu0 0.0
    %96 = vmatprep.subr.mxu0 0.0
    %97 = vmatpush2.msra.mxu0 0.0
    %98 = vmatprep.subr.mxu0 0.0
    %99 = vmatpush2.msra.mxu0 0.0
    %100 = vmatprep.subr.mxu0 0.0
    %101 = vmatpush2.msra.mxu0 0.0
    %102 = vmatprep.mubr.f32.mxu0 0.0
    %103 = vmatmul.mubr.f32.gmra.mxu0 %v36
    %v104 = vpop.f32.mrf.mxu0
    %v105 = vadd.f32 %v32, %v104
    %v106 = vpop.f32.mrf.mxu0
    %107 = vdwg.mxu0
    %vm108 = vcmask 123904
    %109 = vst.msk [vmem:[#allocation2] sm:$0x3] %vm108, %v105
    // Predicated region
    $region14: #{tpu_custom_call.1} parent=1 // pred_check
      _
    $region15: #{tpu_custom_call.1} parent=1 // pred_check_branch
      %111 = sbr.rel (0) target = $region17
    $region16: #{tpu_custom_call.1} parent=1 // pred_region
      %s113 = ssub.s32 32, 32
      %114 = vsyncadd [#allocation3], %s113
      %s116 = sshll.u32 [#allocation2], 4
      %s117 = int_to_ptr.vmem [resolvable:$true] %s116
      %119 = dma.vmem_to_hbm [thread:$0]  %s117, 32, %s3, [#allocation3]
    $region17: #{tpu_custom_call.1} parent=1 // pred_fallthru
      _
    // Predicated region
    $region18: #{tpu_custom_call.1} parent=1 // pred_check
      _
    $region19: #{tpu_custom_call.1} parent=1 // pred_check_branch
      %121 = sbr.rel (0) target = $region21
    $region20: #{tpu_custom_call.1} parent=1 // pred_region
      %122 = dma.done [#allocation3], 32
    $region21: #{tpu_custom_call.1} parent=1 // pred_fallthru
      _
    %123 = vsyncpa [#allocation3], 1

</llo_original>
